<compile_context>
chip_gen: v5e
topology: v5e:2x2
jax: 0.10.0
libtpu: 0.0.40
codegen_flags: <defaults>
</compile_context>

<pallas_src>
import functools

import jax
import jax.numpy as jnp
from jax.experimental import pallas as pl
from jax.experimental.pallas import tpu as pltpu


# ----------------------------------------------------------------------------
# small helpers
# ----------------------------------------------------------------------------
def _round_up(x, m):
    return ((x + m - 1) // m) * m


def _pick_tile(dim, desired, align):
    """Largest tile <= desired that is a multiple of `align` and divides `dim`;
    falls back to the full dim (always legal: block == full array dim)."""
    if dim <= desired:
        return dim
    t = (desired // align) * align
    while t >= align:
        if dim % t == 0:
            return t
        t -= align
    return dim


# ----------------------------------------------------------------------------
# Pallas kernels
# ----------------------------------------------------------------------------
def _avg_matmul_bias_kernel(x1_ref, x2_ref, w_ref, b_ref, o_ref, acc_ref):
    """o = ((x1 + x2) * 0.5) @ w + b, K-tiled with f32 accumulator."""
    k = pl.program_id(2)

    @pl.when(k == 0)
    def _init():
        acc_ref[...] = jnp.zeros_like(acc_ref)

    x = (x1_ref[...] + x2_ref[...]) * 0.5                 # fused avg (VPU, free under MXU)
    acc_ref[...] += jnp.dot(x, w_ref[...], preferred_element_type=jnp.float32)

    @pl.when(k == pl.num_programs(2) - 1)
    def _store():
        # bias added exactly once, on the final K step
        o_ref[...] = (acc_ref[...] + b_ref[...].astype(jnp.float32)).astype(o_ref.dtype)


def _meanpool_fc_kernel(x_ref, w_ref, b_ref, o_ref, acc_ref, *, inv_s):
    """o = mean(x, axis=seq) @ w + b, streaming the seq axis through VMEM."""
    s = pl.program_id(0)

    @pl.when(s == 0)
    def _init():
        acc_ref[...] = jnp.zeros_like(acc_ref)

    acc_ref[...] += jnp.sum(x_ref[...].astype(jnp.float32), axis=1)

    @pl.when(s == pl.num_programs(0) - 1)
    def _store():
        pooled = (acc_ref[...] * inv_s).astype(w_ref.dtype)
        o_ref[...] = (
            jnp.dot(pooled, w_ref[...], preferred_element_type=jnp.float32)
            + b_ref[...].astype(jnp.float32)
        ).astype(o_ref.dtype)


def _extract_avg_at_mask_kernel(pos_ref, x1_ref, x2_ref, o_ref):
    """Gathered row: o[b] = (x1[b, pos[b]] + x2[b, pos[b]]) * 0.5.
    The gather itself happens in the BlockSpec index_map (scalar prefetch)."""
    del pos_ref  # only consumed by the index_maps
    avg = (x1_ref[...] + x2_ref[...]) * 0.5               # (1, 1, 1, H)
    o_ref[...] = avg.reshape(o_ref.shape)                 # (1, 1, H)


# ----------------------------------------------------------------------------
# Wrappers (pallas_call plumbing)
# ----------------------------------------------------------------------------
def fused_avg_linear(x1, x2, w, b, *, tm=256, tn=256, tk=512):
    """y = ((x1 + x2) / 2) @ w + b, with w: [in, out], b: [1, out].

    Output N dim is padded to a multiple of 128 (lane-dense stores) and the
    padding is sliced off here."""
    M, K = x1.shape
    K2, N = w.shape
    assert K == K2 and x2.shape == x1.shape

    n_pad = max(_round_up(N, 128), 128)
    if n_pad != N:
        w = jnp.pad(w, ((0, 0), (0, n_pad - N)))
        b = jnp.pad(b, ((0, 0), (0, n_pad - N)))

    tm = _pick_tile(M, tm, 8)
    tn = _pick_tile(n_pad, tn, 128)
    tk = _pick_tile(K, tk, 128)
    grid = (M // tm, n_pad // tn, K // tk)

    out = pl.pallas_call(
        _avg_matmul_bias_kernel,
        out_shape=jax.ShapeDtypeStruct((M, n_pad), jnp.float32),
        grid_spec=pltpu.PrefetchScalarGridSpec(
            num_scalar_prefetch=0,
            grid=grid,
            in_specs=[
                pl.BlockSpec((tm, tk), lambda i, j, k: (i, k)),
                pl.BlockSpec((tm, tk), lambda i, j, k: (i, k)),
                pl.BlockSpec((tk, tn), lambda i, j, k: (k, j)),
                pl.BlockSpec((1, tn), lambda i, j, k: (0, j)),
            ],
            out_specs=pl.BlockSpec((tm, tn), lambda i, j, k: (i, j)),
            scratch_shapes=[pltpu.VMEM((tm, tn), jnp.float32)],
        ),
        compiler_params=pltpu.CompilerParams(
            dimension_semantics=("parallel", "parallel", "arbitrary")
        ),
    )(x1, x2, w, b)

    return out[:, :N] if n_pad != N else out


def meanpool_linear(x, w, b, *, ts=512):
    """y = mean(x, axis=1) @ w + b, fused (one streaming pass over x)."""
    B, S, H = x.shape
    H2, N = w.shape
    assert H == H2

    n_pad = max(_round_up(N, 128), 128)
    if n_pad != N:
        w = jnp.pad(w, ((0, 0), (0, n_pad - N)))
        b = jnp.pad(b, ((0, 0), (0, n_pad - N)))

    ts = _pick_tile(S, ts, 8)
    grid = (S // ts,)

    kernel = functools.partial(_meanpool_fc_kernel, inv_s=1.0 / S)
    out = pl.pallas_call(
        kernel,
        out_shape=jax.ShapeDtypeStruct((B, n_pad), jnp.float32),
        grid_spec=pltpu.PrefetchScalarGridSpec(
            num_scalar_prefetch=0,
            grid=grid,
            in_specs=[
                pl.BlockSpec((B, ts, H), lambda s: (0, s, 0)),
                pl.BlockSpec((H, n_pad), lambda s: (0, 0)),
                pl.BlockSpec((1, n_pad), lambda s: (0, 0)),
            ],
            out_specs=pl.BlockSpec((B, n_pad), lambda s: (0, 0)),
            scratch_shapes=[pltpu.VMEM((B, H), jnp.float32)],
        ),
        compiler_params=pltpu.CompilerParams(
            dimension_semantics=("arbitrary",)   # reduction axis, output resident
        ),
    )(x, w, b)

    return out[:, :N] if n_pad != N else out


def extract_avg_at_mask(issue_embeds, share_embeds, mask_pos):
    """out[b] = ((issue + share)/2)[b, mask_pos[b]]  -- scalar-prefetch gather.

    Only the selected (1, H) rows are DMA'd.  Arrays are viewed as (B, S, 1, H)
    so the last two block dims equal the full array dims (layout-safe); the
    gathered seq index lives in a leading dim driven by the prefetched scalars."""
    B, S, H = issue_embeds.shape
    x1 = issue_embeds.reshape(B, S, 1, H)
    x2 = share_embeds.reshape(B, S, 1, H)

    out = pl.pallas_call(
        _extract_avg_at_mask_kernel,
        out_shape=jax.ShapeDtypeStruct((B, 1, H), issue_embeds.dtype),
        grid_spec=pltpu.PrefetchScalarGridSpec(
            num_scalar_prefetch=1,
            grid=(B,),
            in_specs=[
                pl.BlockSpec((1, 1, 1, H), lambda b, pos: (b, pos[b], 0, 0)),
                pl.BlockSpec((1, 1, 1, H), lambda b, pos: (b, pos[b], 0, 0)),
            ],
            out_specs=pl.BlockSpec((1, 1, H), lambda b, pos: (b, 0, 0)),
        ),
        compiler_params=pltpu.CompilerParams(
            dimension_semantics=("parallel",)
        ),
    )(mask_pos, x1, x2)

    return out.reshape(B, H)


# ----------------------------------------------------------------------------
# Parameter init (matches nn.Linear + _init_fc_weights: xavier_uniform W, 0 bias)
# ----------------------------------------------------------------------------
def xavier_uniform(key, fan_in, fan_out):
    bound = jnp.sqrt(6.0 / (fan_in + fan_out))
    # stored as [in, out] (transpose of PyTorch's [out, in] weight)
    return jax.random.uniform(
        key, (fan_in, fan_out), jnp.float32, minval=-bound, maxval=bound
    )


def init_params(key, hidden_size, issue_num, pivot_num):
    k1, k2 = jax.random.split(key)
    return {
        "issue_fc_w": xavier_uniform(k1, hidden_size, issue_num),
        "issue_fc_b": jnp.zeros((1, issue_num), jnp.float32),
        "pivot_fc_w": xavier_uniform(k2, hidden_size, pivot_num),
        "pivot_fc_b": jnp.zeros((1, pivot_num), jnp.float32),
    }


# ----------------------------------------------------------------------------
# Forward (mirrors JointMLMDiffMLP.forward with train=True)
# ----------------------------------------------------------------------------
@jax.jit
def joint_mlm_diff_mlp_forward(params, issue_embeds, share_embeds, loss_ids):
    B, S, H = issue_embeds.shape

    # TODO(synk): self.plm(**avg_batch)[0] / self.plm(**issue_batch)[1] are a full
    # transformer; stand-ins (identity seq output == avg embeds, mean-pooled
    # pooler output) keep shapes/dtypes faithful for the downstream kernels.

    # mlm_logits = self.pivot_fc(outputs).view(-1, pivot_num)
    #   with outputs := plm((issue+share)/2)[0]  (identity stand-in)
    # avg is fused into the matmul kernel -- never materialized in HBM.
    mlm_logits = fused_avg_linear(
        issue_embeds.reshape(B * S, H),
        share_embeds.reshape(B * S, H),
        params["pivot_fc_w"],
        params["pivot_fc_b"],
    )                                                     # [B*S, pivot_num]

    # issue_logits = self.issue_fc(plm(issue_batch)[1])  (mean-pool stand-in),
    # pooling + fc fused into one streaming kernel.
    issue_logits = meanpool_linear(
        issue_embeds, params["issue_fc_w"], params["issue_fc_b"]
    )                                                     # [B, issue_num]

    # label_outputs = verbalizer.gather_outputs(post_processing_outputs(outputs))
    # TODO(synk): verbalizer gather/process not translated; identity used.
    # outputs_at_mask = self.extract_at_mask(label_outputs, batch)
    # (single masked position per example -> squeeze branch of the reference).
    mask_pos = jnp.argmax(loss_ids, axis=1).astype(jnp.int32)
    label_words_logits = extract_avg_at_mask(issue_embeds, share_embeds, mask_pos)

    return label_words_logits, issue_logits, mlm_logits


# ----------------------------------------------------------------------------
if __name__ == "__main__":
    B, S, H = 2, 8, 32
    issue_num, pivot_num = 4, 16

    key = jax.random.PRNGKey(0)
    k_param, k_issue, k_share = jax.random.split(key, 3)

    params = init_params(k_param, H, issue_num, pivot_num)

    issue_embeds = jax.random.normal(k_issue, (B, S, H), jnp.float32)
    share_embeds = jax.random.normal(k_share, (B, S, H), jnp.float32)

    # exactly one <mask> position per example
    loss_ids = jnp.zeros((B, S), jnp.int32)
    loss_ids = loss_ids.at[0, 3].set(1).at[1, 5].set(1)

    label_words_logits, issue_logits, mlm_logits = joint_mlm_diff_mlp_forward(
        params, issue_embeds, share_embeds, loss_ids
    )
    jax.block_until_ready((label_words_logits, issue_logits, mlm_logits))

    assert label_words_logits.shape == (B, H)
    assert issue_logits.shape == (B, issue_num)
    assert mlm_logits.shape == (B * S, pivot_num)

    # pure-JAX reference check
    avg = (issue_embeds + share_embeds) * 0.5
    ref_mlm = avg.reshape(B * S, H) @ params["pivot_fc_w"] + params["pivot_fc_b"]
    ref_issue = (
        jnp.mean(issue_embeds, axis=1) @ params["issue_fc_w"] + params["issue_fc_b"]
    )
    pos = jnp.argmax(loss_ids, axis=1)
    ref_label = avg[jnp.arange(B), pos]

    assert jnp.allclose(mlm_logits, ref_mlm, atol=1e-5, rtol=1e-5)
    assert jnp.allclose(issue_logits, ref_issue, atol=1e-5, rtol=1e-5)
    assert jnp.allclose(label_words_logits, ref_label, atol=1e-6)

    print("KERNEL_OK")
</pallas_src>

<mosaic_0001>
module attributes {stable_mosaic.version = 11 : i64} {
  func.func @_extract_avg_at_mask_kernel(%arg0: i32, %arg1: memref<2xi32, #tpu.memory_space<smem>>, %arg2: memref<1x1x1x32xf32, #tpu.memory_space<vmem>>, %arg3: memref<1x1x1x32xf32, #tpu.memory_space<vmem>>, %arg4: memref<1x1x32xf32, #tpu.memory_space<vmem>>) attributes {dimension_semantics = [#tpu.dimension_semantics<parallel>], iteration_bounds = array<i64: 2>, scalar_prefetch = 1 : i64, scratch_operands = 0 : i64, tpu.core_type = #tpu.core_type<tc>, window_params = [{transform_indices = @transform_0, window_bounds = array<i64: 1, 1, 1, 32>}, {transform_indices = @transform_1, window_bounds = array<i64: 1, 1, 1, 32>}, {transform_indices = @transform_2, window_bounds = array<i64: 1, 1, 32>}]} {
    %c0 = arith.constant 0 : index
    %c0_0 = arith.constant 0 : index
    %c0_1 = arith.constant 0 : index
    %c0_2 = arith.constant 0 : index
    %0 = vector.load %arg2[%c0, %c0_0, %c0_1, %c0_2] : memref<1x1x1x32xf32, #tpu.memory_space<vmem>>, vector<1x1x1x32xf32>
    %c0_3 = arith.constant 0 : index
    %c0_4 = arith.constant 0 : index
    %c0_5 = arith.constant 0 : index
    %c0_6 = arith.constant 0 : index
    %1 = vector.load %arg3[%c0_3, %c0_4, %c0_5, %c0_6] : memref<1x1x1x32xf32, #tpu.memory_space<vmem>>, vector<1x1x1x32xf32>
    %2 = arith.addf %0, %1 : vector<1x1x1x32xf32>
    %cst = arith.constant 5.000000e-01 : f32
    %3 = vector.broadcast %cst : f32 to vector<1x1x1x32xf32>
    %4 = arith.mulf %2, %3 : vector<1x1x1x32xf32>
    %5 = vector.shape_cast %4 : vector<1x1x1x32xf32> to vector<1x1x32xf32>
    %c0_7 = arith.constant 0 : index
    %c0_8 = arith.constant 0 : index
    %c0_9 = arith.constant 0 : index
    %6 = vector.load %arg4[%c0_7, %c0_8, %c0_9] : memref<1x1x32xf32, #tpu.memory_space<vmem>>, vector<1x1x32xf32>
    tpu.vector_store %arg4[%c0_7, %c0_8, %c0_9], %5 {strides = array<i32>} : memref<1x1x32xf32, #tpu.memory_space<vmem>>, vector<1x1x32xf32>,
    return
  }
  func.func @transform_0(%arg0: i32, %arg1: memref<2xi32, #tpu.memory_space<smem>>) -> (i32, i32, i32, i32) {
    %0 = arith.index_cast %arg0 : i32 to index
    %1 = memref.load %arg1[%0] : memref<2xi32, #tpu.memory_space<smem>>
    %c0_i32 = arith.constant 0 : i32
    %c0_i32_0 = arith.constant 0 : i32
    %c0_i32_1 = arith.constant 0 : i32
    return %arg0, %1, %c0_i32, %c0_i32_0 : i32, i32, i32, i32
  }
  func.func @transform_1(%arg0: i32, %arg1: memref<2xi32, #tpu.memory_space<smem>>) -> (i32, i32, i32, i32) {
    %0 = arith.index_cast %arg0 : i32 to index
    %1 = memref.load %arg1[%0] : memref<2xi32, #tpu.memory_space<smem>>
    %c0_i32 = arith.constant 0 : i32
    %c0_i32_0 = arith.constant 0 : i32
    %c0_i32_1 = arith.constant 0 : i32
    return %arg0, %1, %c0_i32, %c0_i32_0 : i32, i32, i32, i32
  }
  func.func @transform_2(%arg0: i32, %arg1: memref<2xi32, #tpu.memory_space<smem>>) -> (i32, i32, i32) {
    %c0_i32 = arith.constant 0 : i32
    %c0_i32_0 = arith.constant 0 : i32
    %c0_i32_1 = arith.constant 0 : i32
    return %arg0, %c0_i32, %c0_i32_0 : i32, i32, i32
  }
}

module attributes {stable_mosaic.version = 11 : i64} {
  func.func @_meanpool_fc_kernel(%arg0: i32, %arg1: memref<2x8x32xf32, #tpu.memory_space<vmem>>, %arg2: memref<32x128xf32, #tpu.memory_space<vmem>>, %arg3: memref<1x128xf32, #tpu.memory_space<vmem>>, %arg4: memref<2x128xf32, #tpu.memory_space<vmem>>, %arg5: memref<2x32xf32, #tpu.memory_space<vmem>>) attributes {dimension_semantics = [#tpu.dimension_semantics<arbitrary>], iteration_bounds = array<i64: 1>, scalar_prefetch = 0 : i64, scratch_operands = 1 : i64, tpu.core_type = #tpu.core_type<tc>, window_params = [{transform_indices = @transform_0, window_bounds = array<i64: 2, 8, 32>}, {pipeline_mode = #tpu.pipeline_mode<synchronous>, transform_indices = @transform_1, window_bounds = array<i64: 32, 128>}, {pipeline_mode = #tpu.pipeline_mode<synchronous>, transform_indices = @transform_2, window_bounds = array<i64: 1, 128>}, {pipeline_mode = #tpu.pipeline_mode<synchronous>, transform_indices = @transform_3, window_bounds = array<i64: 2, 128>}]} {
    %c0_i32 = arith.constant 0 : i32
    %0 = arith.cmpi eq, %arg0, %c0_i32 : i32
    %1 = arith.extui %0 : i1 to i32
    %c0_i32_0 = arith.constant 0 : i32
    %2 = arith.cmpi ne, %1, %c0_i32_0 : i32
    scf.if %2 {
      %cst_9 = arith.constant 0.000000e+00 : f32
      %11 = vector.broadcast %cst_9 : f32 to vector<2x32xf32>
      %c0_10 = arith.constant 0 : index
      %c0_11 = arith.constant 0 : index
      %12 = vector.load %arg5[%c0_10, %c0_11] : memref<2x32xf32, #tpu.memory_space<vmem>>, vector<2x32xf32>
      tpu.vector_store %arg5[%c0_10, %c0_11], %11 {strides = array<i32>} : memref<2x32xf32, #tpu.memory_space<vmem>>, vector<2x32xf32>,
    } else {
    }
    %c0 = arith.constant 0 : index
    %c0_1 = arith.constant 0 : index
    %3 = vector.load %arg5[%c0, %c0_1] : memref<2x32xf32, #tpu.memory_space<vmem>>, vector<2x32xf32>
    %c0_2 = arith.constant 0 : index
    %c0_3 = arith.constant 0 : index
    %c0_4 = arith.constant 0 : index
    %4 = vector.load %arg1[%c0_2, %c0_3, %c0_4] : memref<2x8x32xf32, #tpu.memory_space<vmem>>, vector<2x8x32xf32>
    %cst = arith.constant dense<0.000000e+00> : vector<2x32xf32>
    %5 = vector.multi_reduction <add>, %4, %cst [1] : vector<2x8x32xf32> to vector<2x32xf32>
    %6 = arith.addf %3, %5 : vector<2x32xf32>
    %c0_5 = arith.constant 0 : index
    %c0_6 = arith.constant 0 : index
    %7 = vector.load %arg5[%c0_5, %c0_6] : memref<2x32xf32, #tpu.memory_space<vmem>>, vector<2x32xf32>
    tpu.vector_store %arg5[%c0_5, %c0_6], %6 {strides = array<i32>} : memref<2x32xf32, #tpu.memory_space<vmem>>, vector<2x32xf32>,
    %c0_i32_7 = arith.constant 0 : i32
    %8 = arith.cmpi eq, %arg0, %c0_i32_7 : i32
    %9 = arith.extui %8 : i1 to i32
    %c0_i32_8 = arith.constant 0 : i32
    %10 = arith.cmpi ne, %9, %c0_i32_8 : i32
    scf.if %10 {
      %c0_9 = arith.constant 0 : index
      %c0_10 = arith.constant 0 : index
      %11 = vector.load %arg5[%c0_9, %c0_10] : memref<2x32xf32, #tpu.memory_space<vmem>>, vector<2x32xf32>
      %cst_11 = arith.constant 1.250000e-01 : f32
      %12 = vector.broadcast %cst_11 : f32 to vector<2x32xf32>
      %13 = arith.mulf %11, %12 : vector<2x32xf32>
      %c0_12 = arith.constant 0 : index
      %c0_13 = arith.constant 0 : index
      %14 = vector.load %arg2[%c0_12, %c0_13] : memref<32x128xf32, #tpu.memory_space<vmem>>, vector<32x128xf32>
      %cst_14 = arith.constant dense<0.000000e+00> : vector<2x128xf32>
      %15 = tpu.matmul %13, %14, %cst_14 {dimension_numbers = #tpu.dot_dimension_numbers<[1], [0], [0], [1], [0, 0, 1, 1], [], []>} : vector<2x32xf32>, vector<32x128xf32>, vector<2x128xf32> -> vector<2x128xf32>
      %c0_15 = arith.constant 0 : index
      %c0_16 = arith.constant 0 : index
      %16 = vector.load %arg3[%c0_15, %c0_16] : memref<1x128xf32, #tpu.memory_space<vmem>>, vector<1x128xf32>
      %17 = vector.broadcast %16 : vector<1x128xf32> to vector<2x128xf32>
      %18 = arith.addf %15, %17 : vector<2x128xf32>
      %c0_17 = arith.constant 0 : index
      %c0_18 = arith.constant 0 : index
      %19 = vector.load %arg4[%c0_17, %c0_18] : memref<2x128xf32, #tpu.memory_space<vmem>>, vector<2x128xf32>
      tpu.vector_store %arg4[%c0_17, %c0_18], %18 {strides = array<i32>} : memref<2x128xf32, #tpu.memory_space<vmem>>, vector<2x128xf32>,
    } else {
    }
    return
  }
  func.func @transform_0(%arg0: i32) -> (i32, i32, i32) {
    %c0_i32 = arith.constant 0 : i32
    %c0_i32_0 = arith.constant 0 : i32
    %c0_i32_1 = arith.constant 0 : i32
    return %c0_i32, %arg0, %c0_i32_0 : i32, i32, i32
  }
  func.func @transform_1(%arg0: i32) -> (i32, i32) {
    %c0_i32 = arith.constant 0 : i32
    %c0_i32_0 = arith.constant 0 : i32
    %c0_i32_1 = arith.constant 0 : i32
    return %c0_i32, %c0_i32_0 : i32, i32
  }
  func.func @transform_2(%arg0: i32) -> (i32, i32) {
    %c0_i32 = arith.constant 0 : i32
    %c0_i32_0 = arith.constant 0 : i32
    %c0_i32_1 = arith.constant 0 : i32
    return %c0_i32, %c0_i32_0 : i32, i32
  }
  func.func @transform_3(%arg0: i32) -> (i32, i32) {
    %c0_i32 = arith.constant 0 : i32
    %c0_i32_0 = arith.constant 0 : i32
    %c0_i32_1 = arith.constant 0 : i32
    return %c0_i32, %c0_i32_0 : i32, i32
  }
}

module attributes {stable_mosaic.version = 11 : i64} {
  func.func @_avg_matmul_bias_kernel(%arg0: i32, %arg1: i32, %arg2: i32, %arg3: memref<16x32xf32, #tpu.memory_space<vmem>>, %arg4: memref<16x32xf32, #tpu.memory_space<vmem>>, %arg5: memref<32x128xf32, #tpu.memory_space<vmem>>, %arg6: memref<1x128xf32, #tpu.memory_space<vmem>>, %arg7: memref<16x128xf32, #tpu.memory_space<vmem>>, %arg8: memref<16x128xf32, #tpu.memory_space<vmem>>) attributes {dimension_semantics = [#tpu.dimension_semantics<parallel>, #tpu.dimension_semantics<parallel>, #tpu.dimension_semantics<arbitrary>], iteration_bounds = array<i64: 1, 1, 1>, scalar_prefetch = 0 : i64, scratch_operands = 1 : i64, tpu.core_type = #tpu.core_type<tc>, window_params = [{transform_indices = @transform_0, window_bounds = array<i64: 16, 32>}, {transform_indices = @transform_1, window_bounds = array<i64: 16, 32>}, {transform_indices = @transform_2, window_bounds = array<i64: 32, 128>}, {transform_indices = @transform_3, window_bounds = array<i64: 1, 128>}, {transform_indices = @transform_4, window_bounds = array<i64: 16, 128>}]} {
    %c0_i32 = arith.constant 0 : i32
    %0 = arith.cmpi eq, %arg2, %c0_i32 : i32
    %1 = arith.extui %0 : i1 to i32
    %c0_i32_0 = arith.constant 0 : i32
    %2 = arith.cmpi ne, %1, %c0_i32_0 : i32
    scf.if %2 {
      %cst_13 = arith.constant 0.000000e+00 : f32
      %16 = vector.broadcast %cst_13 : f32 to vector<16x128xf32>
      %c0_14 = arith.constant 0 : index
      %c0_15 = arith.constant 0 : index
      %17 = vector.load %arg8[%c0_14, %c0_15] : memref<16x128xf32, #tpu.memory_space<vmem>>, vector<16x128xf32>
      tpu.vector_store %arg8[%c0_14, %c0_15], %16 {strides = array<i32>} : memref<16x128xf32, #tpu.memory_space<vmem>>, vector<16x128xf32>,
    } else {
    }
    %c0 = arith.constant 0 : index
    %c0_1 = arith.constant 0 : index
    %3 = vector.load %arg3[%c0, %c0_1] : memref<16x32xf32, #tpu.memory_space<vmem>>, vector<16x32xf32>
    %c0_2 = arith.constant 0 : index
    %c0_3 = arith.constant 0 : index
    %4 = vector.load %arg4[%c0_2, %c0_3] : memref<16x32xf32, #tpu.memory_space<vmem>>, vector<16x32xf32>
    %5 = arith.addf %3, %4 : vector<16x32xf32>
    %cst = arith.constant 5.000000e-01 : f32
    %6 = vector.broadcast %cst : f32 to vector<16x32xf32>
    %7 = arith.mulf %5, %6 : vector<16x32xf32>
    %c0_4 = arith.constant 0 : index
    %c0_5 = arith.constant 0 : index
    %8 = vector.load %arg8[%c0_4, %c0_5] : memref<16x128xf32, #tpu.memory_space<vmem>>, vector<16x128xf32>
    %c0_6 = arith.constant 0 : index
    %c0_7 = arith.constant 0 : index
    %9 = vector.load %arg5[%c0_6, %c0_7] : memref<32x128xf32, #tpu.memory_space<vmem>>, vector<32x128xf32>
    %cst_8 = arith.constant dense<0.000000e+00> : vector<16x128xf32>
    %10 = tpu.matmul %7, %9, %cst_8 {dimension_numbers = #tpu.dot_dimension_numbers<[1], [0], [0], [1], [0, 0, 1, 1], [], []>} : vector<16x32xf32>, vector<32x128xf32>, vector<16x128xf32> -> vector<16x128xf32>
    %11 = arith.addf %8, %10 : vector<16x128xf32>
    %c0_9 = arith.constant 0 : index
    %c0_10 = arith.constant 0 : index
    %12 = vector.load %arg8[%c0_9, %c0_10] : memref<16x128xf32, #tpu.memory_space<vmem>>, vector<16x128xf32>
    tpu.vector_store %arg8[%c0_9, %c0_10], %11 {strides = array<i32>} : memref<16x128xf32, #tpu.memory_space<vmem>>, vector<16x128xf32>,
    %c0_i32_11 = arith.constant 0 : i32
    %13 = arith.cmpi eq, %arg2, %c0_i32_11 : i32
    %14 = arith.extui %13 : i1 to i32
    %c0_i32_12 = arith.constant 0 : i32
    %15 = arith.cmpi ne, %14, %c0_i32_12 : i32
    scf.if %15 {
      %c0_13 = arith.constant 0 : index
      %c0_14 = arith.constant 0 : index
      %16 = vector.load %arg8[%c0_13, %c0_14] : memref<16x128xf32, #tpu.memory_space<vmem>>, vector<16x128xf32>
      %c0_15 = arith.constant 0 : index
      %c0_16 = arith.constant 0 : index
      %17 = vector.load %arg6[%c0_15, %c0_16] : memref<1x128xf32, #tpu.memory_space<vmem>>, vector<1x128xf32>
      %18 = vector.broadcast %17 : vector<1x128xf32> to vector<16x128xf32>
      %19 = arith.addf %16, %18 : vector<16x128xf32>
      %c0_17 = arith.constant 0 : index
      %c0_18 = arith.constant 0 : index
      %20 = vector.load %arg7[%c0_17, %c0_18] : memref<16x128xf32, #tpu.memory_space<vmem>>, vector<16x128xf32>
      tpu.vector_store %arg7[%c0_17, %c0_18], %19 {strides = array<i32>} : memref<16x128xf32, #tpu.memory_space<vmem>>, vector<16x128xf32>,
    } else {
    }
    return
  }
  func.func @transform_0(%arg0: i32, %arg1: i32, %arg2: i32) -> (i32, i32) {
    %c0_i32 = arith.constant 0 : i32
    return %arg0, %arg2 : i32, i32
  }
  func.func @transform_1(%arg0: i32, %arg1: i32, %arg2: i32) -> (i32, i32) {
    %c0_i32 = arith.constant 0 : i32
    return %arg0, %arg2 : i32, i32
  }
  func.func @transform_2(%arg0: i32, %arg1: i32, %arg2: i32) -> (i32, i32) {
    %c0_i32 = arith.constant 0 : i32
    return %arg2, %arg1 : i32, i32
  }
  func.func @transform_3(%arg0: i32, %arg1: i32, %arg2: i32) -> (i32, i32) {
    %c0_i32 = arith.constant 0 : i32
    %c0_i32_0 = arith.constant 0 : i32
    return %c0_i32, %arg1 : i32, i32
  }
  func.func @transform_4(%arg0: i32, %arg1: i32, %arg2: i32) -> (i32, i32) {
    %c0_i32 = arith.constant 0 : i32
    return %arg0, %arg1 : i32, i32
  }
}

</mosaic_0001>

<llo_original>
// kernel: joint_mlm_diff_mlp_forward.5
$region0: #{joint_mlm_diff_mlp_forward.5}
  #allocation0 [shape = 'u32[]', space=smem, size = 0x4, offset = 0x4, fixed_abs, tag = 'smem constant byte address 0x4 - core index']
  #allocation1 [shape = 'u32[72,128]{1,0:T(1,128)}', space=vmem, size = 0x9000, scoped, tag = 'internal scratch']
  #allocation2 [shape = 's32[1]{0}', space=sflag, size = 0x4, scoped, tag = 'scoped memory for joint_mlm_diff_mlp_forward.5']
  #allocation3 [shape = 'u8[512]{0}', space=smem, size = 0x200, scoped, tag = 'prefetched SMEM operand 0']
  %s0 = inlined_call_operand.vmem [shape: s32[2], index: 0, kind: input, shape index: {}]
  %s1 = inlined_call_operand.hbm [shape: f32[2,8,1,32], index: 1, kind: input, shape index: {}]
  %s2 = inlined_call_operand.hbm [shape: f32[2,8,1,32], index: 2, kind: input, shape index: {}]
  %s3 = inlined_call_operand.hbm [shape: f32[2,1,32], index: 3, kind: output, shape index: {}]
  %s4 = sld [smem:[#allocation0]]
  $region49: #{joint_mlm_diff_mlp_forward.5} parent=0
    _
  %s6 = ssub.s32 1, %s4
  %s7 = scalar_select 0, %s6, %s4
  %s9 = sshll.u32 %s0, 4
  %s10 = int_to_ptr.vmem [resolvable:$true] %s9
  %12 = dma.vmem_to_smem %s10, 16, [#allocation3], [#allocation2]
  %14 = dma.done [#allocation2], 16
  %15 = sfence
  $region1: #{joint_mlm_diff_mlp_forward.5} parent=0
    #allocation4 [shape = 'u8[1024]{0}', space=vmem, size = 0x400, scoped, tag = 'input window, operand 1']
    #allocation5 [shape = 's32[2]{0}', space=sflag, size = 0x8, scoped, tag = 'scoped memory for joint_mlm_diff_mlp_forward.5']
    #allocation6 [shape = 's32[2]{0}', space=sflag, size = 0x8, scoped, tag = 'scoped memory for joint_mlm_diff_mlp_forward.5']
    #allocation7 [shape = 'u8[1024]{0}', space=vmem, size = 0x400, scoped, tag = 'input window, operand 2']
    #allocation8 [shape = 's32[2]{0}', space=sflag, size = 0x8, scoped, tag = 'scoped memory for joint_mlm_diff_mlp_forward.5']
    #allocation9 [shape = 'u8[1024]{0}', space=vmem, size = 0x400, scoped, tag = 'output window, operand 0']
    %16 = vsyncpa [#allocation5], 0
    %s17 = scalar_lea.sflag [#allocation5], 1
    %18 = vsyncpa %s17, 0
    %19 = vsyncpa [#allocation8], 0
    %s20 = scalar_lea.sflag [#allocation8], 1
    %21 = vsyncpa %s20, 0
    %22 = vsyncpa [#allocation6], 0
    %s23 = scalar_lea.sflag [#allocation6], 1
    %24 = vsyncpa %s23, 0
    loop: start=0, step=1, limit=4
    $region2: #{joint_mlm_diff_mlp_forward.5} parent=1 // loop_pre_header
      _
    $region3: #{joint_mlm_diff_mlp_forward.5} parent=1 // loop_header
      %s26 = sphi 0, %s30
      %p27 = scmp.ge.s32.totalorder %s26, 4
      %s40 = sphi 0, %s42
      %s43 = sphi 0, %s40
      %s44 = sphi 0, %s43
      %s60 = sphi 0, %s44
      %s70 = sphi 0, %s72
      %s73 = sphi 0, %s70
      %s74 = sphi 0, %s73
      %s90 = sphi 0, %s74
      %s96 = sphi 0, %s98
      %s99 = sphi 0, %s96
      %s100 = sphi 0, %s99
      %s116 = sphi 0, %s100
    $region4: #{joint_mlm_diff_mlp_forward.5} parent=1 // loop_header_branch
      %29 = sbr.rel (%p27) target = $region8
    $region5: #{joint_mlm_diff_mlp_forward.5} parent=1 // loop_body
      %s31 = ssub.s32 %s26, 1
      %s32 = ssub.s32 %s26, 2
      %s33 = sadd.s32 %s26, 1
      %s34 = sld [smem:[#allocation3 + %s26]]
      %s35 = sld [smem:[#allocation3 + %s33]]
      %s36 = ssub.s32 %s26, %s33
      %s37 = ssub.s32 %s34, %s35
      %s38 = sor.u32 %s36, %s37
      %p39 = scmp.eq.s32.totalorder %s38, 0
      %s41 = sadd.s32 %s40, 1
      %s42 = scalar_select %p39, %s40, %s41
      %p45 = pneg %p39
      %p46 = scmp.eq.s32.totalorder %s26, 1
      %p47 = por %p45, %p46
      %p48 = scmp.ne.s32.totalorder %s40, %s43
      %p49 = scmp.eq.s32.totalorder %s26, 0
      %p50 = por %p48, %p49
      %p51 = scmp.ne.s32.totalorder %s40, %s43
      %p52 = scmp.eq.s32.totalorder %s31, 1
      %p53 = por %p51, %p52
      %p54 = scmp.ne.s32.totalorder %s43, %s44
      %p55 = scmp.eq.s32.totalorder %s31, 0
      %p56 = por %p54, %p55
      %p57 = scmp.ne.s32.totalorder %s43, %s44
      %p58 = scmp.eq.s32.totalorder %s32, 1
      %p59 = por %p57, %p58
      %p61 = scmp.ne.s32.totalorder %s44, %s60
      %p62 = scmp.eq.s32.totalorder %s32, 0
      %p63 = por %p61, %p62
      %s64 = sld [smem:[#allocation3 + %s26]]
      %s65 = sld [smem:[#allocation3 + %s33]]
      %s66 = ssub.s32 %s26, %s33
      %s67 = ssub.s32 %s64, %s65
      %s68 = sor.u32 %s66, %s67
      %p69 = scmp.eq.s32.totalorder %s68, 0
      %s71 = sadd.s32 %s70, 1
      %s72 = scalar_select %p69, %s70, %s71
      %p75 = pneg %p69
      %p76 = scmp.eq.s32.totalorder %s26, 1
      %p77 = por %p75, %p76
      %p78 = scmp.ne.s32.totalorder %s70, %s73
      %p79 = scmp.eq.s32.totalorder %s26, 0
      %p80 = por %p78, %p79
      %p81 = scmp.ne.s32.totalorder %s70, %s73
      %p82 = scmp.eq.s32.totalorder %s31, 1
      %p83 = por %p81, %p82
      %p84 = scmp.ne.s32.totalorder %s73, %s74
      %p85 = scmp.eq.s32.totalorder %s31, 0
      %p86 = por %p84, %p85
      %p87 = scmp.ne.s32.totalorder %s73, %s74
      %p88 = scmp.eq.s32.totalorder %s32, 1
      %p89 = por %p87, %p88
      %p91 = scmp.ne.s32.totalorder %s74, %s90
      %p92 = scmp.eq.s32.totalorder %s32, 0
      %p93 = por %p91, %p92
      %s94 = ssub.s32 %s26, %s33
      %p95 = scmp.eq.s32.totalorder %s94, 0
      %s97 = sadd.s32 %s96, 1
      %s98 = scalar_select %p95, %s96, %s97
      %p101 = pneg %p95
      %p102 = scmp.eq.s32.totalorder %s26, 1
      %p103 = por %p101, %p102
      %p104 = scmp.ne.s32.totalorder %s96, %s99
      %p105 = scmp.eq.s32.totalorder %s26, 0
      %p106 = por %p104, %p105
      %p107 = scmp.ne.s32.totalorder %s96, %s99
      %p108 = scmp.eq.s32.totalorder %s31, 1
      %p109 = por %p107, %p108
      %p110 = scmp.ne.s32.totalorder %s99, %s100
      %p111 = scmp.eq.s32.totalorder %s31, 0
      %p112 = por %p110, %p111
      %p113 = scmp.ne.s32.totalorder %s99, %s100
      %p114 = scmp.eq.s32.totalorder %s32, 1
      %p115 = por %p113, %p114
      %p117 = scmp.ne.s32.totalorder %s100, %s116
      %p118 = scmp.eq.s32.totalorder %s32, 0
      %p119 = por %p117, %p118
      %p120 = scmp.le.s32.totalorder 1, %s26
      %p121 = scmp.lt.s32.totalorder %s26, 3
      %p122 = pnand %p120, %p121
      %p123 = pneg %p122
      // Predicated region
      $region9: #{joint_mlm_diff_mlp_forward.5} parent=5 // pred_check
        _
      $region10: #{joint_mlm_diff_mlp_forward.5} parent=5 // pred_check_branch
        %125 = sbr.rel (%p122) target = $region12
      $region11: #{joint_mlm_diff_mlp_forward.5} parent=5 // pred_region
        %s126 = ssub.s32 %s26, 1
      $region12: #{joint_mlm_diff_mlp_forward.5} parent=5 // pred_fallthru
        _
      %p127 = scmp.lt.s32.totalorder %s26, 2
      // Predicated region
      $region13: #{joint_mlm_diff_mlp_forward.5} parent=5 // pred_check
        %p128 = pneg %p127
      $region14: #{joint_mlm_diff_mlp_forward.5} parent=5 // pred_check_branch
        %130 = sbr.rel (%p128) target = $region16
      $region15: #{joint_mlm_diff_mlp_forward.5} parent=5 // pred_region
        // Predicated region
        $region17: #{joint_mlm_diff_mlp_forward.5} parent=15 // pred_check
          %p131 = pneg %p50
        $region18: #{joint_mlm_diff_mlp_forward.5} parent=15 // pred_check_branch
          %133 = sbr.rel (%p131) target = $region20
        $region19: #{joint_mlm_diff_mlp_forward.5} parent=15 // pred_region
          %s134 = sand.u32 %s40, 1
          %s135 = scalar_lea.sflag [#allocation5], %s134
          %s136 = sand.u32 %s40, 1
          %s137 = scalar_lea.vmem [#allocation4], %s136
          %s138 = sld [smem:[#allocation3 + %s26]]
          %140 = vsyncadd %s135, 0
          %s141 = smul.addr %s26, 8
          %s142 = sadd.s32 %s138, %s141
          %s143 = scalar_lea.hbm %s1, %s142
          %s145 = sshll.u32 %s143, 4
          %s146 = int_to_ptr.hbm [resolvable:$true] %s145
          %s147 = sshll.u32 %s137, 4
          %s148 = int_to_ptr.vmem [resolvable:$true] %s147
          %150 = dma.hbm_to_vmem [thread:$0]  %s146, 16, %s148, %s135
        $region20: #{joint_mlm_diff_mlp_forward.5} parent=15 // pred_fallthru
          _
        // Predicated region
        $region21: #{joint_mlm_diff_mlp_forward.5} parent=15 // pred_check
          %p151 = pneg %p80
        $region22: #{joint_mlm_diff_mlp_forward.5} parent=15 // pred_check_branch
          %153 = sbr.rel (%p151) target = $region24
        $region23: #{joint_mlm_diff_mlp_forward.5} parent=15 // pred_region
          %s154 = sand.u32 %s70, 1
          %s155 = scalar_lea.sflag [#allocation8], %s154
          %s156 = sand.u32 %s70, 1
          %s157 = scalar_lea.vmem [#allocation7], %s156
          %s158 = sld [smem:[#allocation3 + %s26]]
          %160 = vsyncadd %s155, 0
          %s161 = smul.addr %s26, 8
          %s162 = sadd.s32 %s158, %s161
          %s163 = scalar_lea.hbm %s2, %s162
          %s165 = sshll.u32 %s163, 4
          %s166 = int_to_ptr.hbm [resolvable:$true] %s165
          %s167 = sshll.u32 %s157, 4
          %s168 = int_to_ptr.vmem [resolvable:$true] %s167
          %170 = dma.hbm_to_vmem [thread:$0]  %s166, 16, %s168, %s155
        $region24: #{joint_mlm_diff_mlp_forward.5} parent=15 // pred_fallthru
          _
      $region16: #{joint_mlm_diff_mlp_forward.5} parent=5 // pred_fallthru
        _
      %p171 = scmp.le.s32.totalorder 1, %s26
      %p172 = scmp.lt.s32.totalorder %s26, 3
      %p173 = pnand %p171, %p172
      %p174 = pneg %p173
      // Predicated region
      $region25: #{joint_mlm_diff_mlp_forward.5} parent=5 // pred_check
        _
      $region26: #{joint_mlm_diff_mlp_forward.5} parent=5 // pred_check_branch
        %176 = sbr.rel (%p173) target = $region28
      $region27: #{joint_mlm_diff_mlp_forward.5} parent=5 // pred_region
        %s177 = ssub.s32 %s26, 1
        %s178 = sand.u32 %s43, 1
        %s179 = scalar_lea.sflag [#allocation5], %s178
        %s180 = sand.u32 %s43, 1
        %s181 = scalar_lea.vmem [#allocation4], %s180
        // Predicated region
        $region29: #{joint_mlm_diff_mlp_forward.5} parent=27 // pred_check
          %p182 = pneg %p56
        $region30: #{joint_mlm_diff_mlp_forward.5} parent=27 // pred_check_branch
          %184 = sbr.rel (%p182) target = $region32
        $region31: #{joint_mlm_diff_mlp_forward.5} parent=27 // pred_region
          %186 = dma.done %s179, 16
        $region32: #{joint_mlm_diff_mlp_forward.5} parent=27 // pred_fallthru
          _
        %s187 = sand.u32 %s73, 1
        %s188 = scalar_lea.sflag [#allocation8], %s187
        %s189 = sand.u32 %s73, 1
        %s190 = scalar_lea.vmem [#allocation7], %s189
        // Predicated region
        $region33: #{joint_mlm_diff_mlp_forward.5} parent=27 // pred_check
          %p191 = pneg %p86
        $region34: #{joint_mlm_diff_mlp_forward.5} parent=27 // pred_check_branch
          %193 = sbr.rel (%p191) target = $region36
        $region35: #{joint_mlm_diff_mlp_forward.5} parent=27 // pred_region
          %195 = dma.done %s188, 16
        $region36: #{joint_mlm_diff_mlp_forward.5} parent=27 // pred_fallthru
          _
        %s196 = sand.u32 %s43, 1
        %s197 = scalar_lea.sflag [#allocation5], %s196
        %s198 = sand.u32 %s43, 1
        %s199 = scalar_lea.vmem [#allocation4], %s198
        %p200 = pneg %p56
        %p201 = pneg %p53
        %s202 = sand.u32 %s73, 1
        %s203 = scalar_lea.sflag [#allocation8], %s202
        %s204 = sand.u32 %s73, 1
        %s205 = scalar_lea.vmem [#allocation7], %s204
        %p206 = pneg %p86
        %p207 = pneg %p83
        %p208 = pneg %p112
        %p209 = pneg %p109
        %s210 = sand.u32 %s99, 1
        %s211 = scalar_lea.sflag [#allocation6], %s210
        %s212 = sand.u32 %s99, 1
        %s213 = scalar_lea.vmem [#allocation9], %s212
        %s214 = sld [smem:[#allocation3 + %s31]]
        %s215 = sld [smem:[#allocation3 + %s31]]
        %v216 = vld [vmem:[%s181] sm:$0x1]
        %v217 = vld [vmem:[%s190] sm:$0x1]
        %v218 = vadd.f32 %v216, %v217
        %v219 = vmul.f32 %v218, 0.5
        %vm220 = vcmask 253952
        %221 = vst.msk [vmem:[%s213] sm:$0x1] %vm220, %v219
        %s222 = sand.u32 %s99, 1
        %s223 = scalar_lea.sflag [#allocation6], %s222
        %s224 = sand.u32 %s99, 1
        %s225 = scalar_lea.vmem [#allocation9], %s224
        // Predicated region
        $region37: #{joint_mlm_diff_mlp_forward.5} parent=27 // pred_check
          %p226 = pneg %p109
        $region38: #{joint_mlm_diff_mlp_forward.5} parent=27 // pred_check_branch
          %228 = sbr.rel (%p226) target = $region40
        $region39: #{joint_mlm_diff_mlp_forward.5} parent=27 // pred_region
          %230 = vsyncadd %s223, 0
          %s231 = scalar_lea.hbm %s3, %s31
          %s233 = sshll.u32 %s225, 4
          %s234 = int_to_ptr.vmem [resolvable:$true] %s233
          %s235 = sshll.u32 %s231, 4
          %s236 = int_to_ptr.hbm [resolvable:$true] %s235
          %238 = dma.vmem_to_hbm [thread:$0]  %s234, 16, %s236, %s223
        $region40: #{joint_mlm_diff_mlp_forward.5} parent=27 // pred_fallthru
          _
      $region28: #{joint_mlm_diff_mlp_forward.5} parent=5 // pred_fallthru
        _
      %p239 = scmp.le.s32.totalorder 2, %s26
      // Predicated region
      $region41: #{joint_mlm_diff_mlp_forward.5} parent=5 // pred_check
        %p240 = pneg %p239
      $region42: #{joint_mlm_diff_mlp_forward.5} parent=5 // pred_check_branch
        %242 = sbr.rel (%p240) target = $region44
      $region43: #{joint_mlm_diff_mlp_forward.5} parent=5 // pred_region
        %s243 = ssub.s32 %s26, 2
        // Predicated region
        $region45: #{joint_mlm_diff_mlp_forward.5} parent=43 // pred_check
          %p244 = pneg %p115
        $region46: #{joint_mlm_diff_mlp_forward.5} parent=43 // pred_check_branch
          %246 = sbr.rel (%p244) target = $region48
        $region47: #{joint_mlm_diff_mlp_forward.5} parent=43 // pred_region
          %s247 = sand.u32 %s100, 1
          %s248 = scalar_lea.sflag [#allocation6], %s247
          %s249 = sand.u32 %s100, 1
          %s250 = scalar_lea.vmem [#allocation9], %s249
          %252 = dma.done %s248, 16
        $region48: #{joint_mlm_diff_mlp_forward.5} parent=43 // pred_fallthru
          _
      $region44: #{joint_mlm_diff_mlp_forward.5} parent=5 // pred_fallthru
        _
    $region6: #{joint_mlm_diff_mlp_forward.5} parent=1 // loop_footer
      %s30 = sadd.s32 1, %s26
    $region7: #{joint_mlm_diff_mlp_forward.5} parent=1 // loop_footer_branch
      %25 = sbr.rel target = $region3
    $region8: #{joint_mlm_diff_mlp_forward.5} parent=1 // loop_exit
      _
    %253 = vsyncpa [#allocation5], 1
    %s254 = scalar_lea.sflag [#allocation5], 1
    %255 = vsyncpa %s254, 1
    %256 = vsyncpa [#allocation8], 1
    %s257 = scalar_lea.sflag [#allocation8], 1
    %258 = vsyncpa %s257, 1
    %259 = vsyncpa [#allocation6], 1
    %s260 = scalar_lea.sflag [#allocation6], 1
    %261 = vsyncpa %s260, 1

// kernel: joint_mlm_diff_mlp_forward.4
$region0: #{joint_mlm_diff_mlp_forward.4}
  #allocation0 [shape = 'u32[]', space=smem, size = 0x4, offset = 0x4, fixed_abs, tag = 'smem constant byte address 0x4 - core index']
  #allocation1 [shape = 'u32[72,128]{1,0:T(1,128)}', space=vmem, size = 0x9000, scoped, tag = 'internal scratch']
  #allocation2 [shape = 'f32[2,32]{1,0:T(2,128)}', space=vmem, size = 0x400, scoped, tag = 'scratch operand']
  %s0 = inlined_call_operand.vmem [shape: f32[2,8,32], index: 0, kind: input, shape index: {}]
  %s1 = inlined_call_operand.vmem [shape: f32[32,128], index: 1, kind: input, shape index: {}]
  %s2 = inlined_call_operand.vmem [shape: f32[1,128], index: 2, kind: input, shape index: {}]
  %s3 = inlined_call_operand.hbm [shape: f32[2,128], index: 3, kind: output, shape index: {}]
  %s4 = sld [smem:[#allocation0]]
  $region30: #{joint_mlm_diff_mlp_forward.4} parent=0
    _
  %s6 = ssub.s32 1, %s4
  %s7 = scalar_select 0, %s6, %s4
  $region1: #{joint_mlm_diff_mlp_forward.4} parent=0
    #allocation3 [shape = 'u8[1024]{0}', space=vmem, size = 0x400, scoped, tag = 'output window, operand 0, single buffered']
    #allocation4 [shape = 's32[1]{0}', space=sflag, size = 0x4, scoped, tag = 'scoped memory for joint_mlm_diff_mlp_forward.4']
    %8 = vsyncpa [#allocation4], 0
    // Predicated region
    $region2: #{joint_mlm_diff_mlp_forward.4} parent=1 // pred_check
      _
    $region3: #{joint_mlm_diff_mlp_forward.4} parent=1 // pred_check_branch
      %10 = sbr.rel (0) target = $region5
    $region4: #{joint_mlm_diff_mlp_forward.4} parent=1 // pred_region
      _
    $region5: #{joint_mlm_diff_mlp_forward.4} parent=1 // pred_fallthru
      _
    // Predicated region
    $region6: #{joint_mlm_diff_mlp_forward.4} parent=1 // pred_check
      _
    $region7: #{joint_mlm_diff_mlp_forward.4} parent=1 // pred_check_branch
      %12 = sbr.rel (0) target = $region9
    $region8: #{joint_mlm_diff_mlp_forward.4} parent=1 // pred_region
      _
    $region9: #{joint_mlm_diff_mlp_forward.4} parent=1 // pred_fallthru
      _
    // Predicated region
    $region10: #{joint_mlm_diff_mlp_forward.4} parent=1 // pred_check
      _
    $region11: #{joint_mlm_diff_mlp_forward.4} parent=1 // pred_check_branch
      %14 = sbr.rel (0) target = $region13
    $region12: #{joint_mlm_diff_mlp_forward.4} parent=1 // pred_region
      _
    $region13: #{joint_mlm_diff_mlp_forward.4} parent=1 // pred_fallthru
      _
    %p15 = scmp.eq.s32.totalorder 0, 0
    // Predicated region
    $region14: #{joint_mlm_diff_mlp_forward.4} parent=1 // pred_check
      %p16 = pneg %p15
    $region15: #{joint_mlm_diff_mlp_forward.4} parent=1 // pred_check_branch
      %18 = sbr.rel (%p16) target = $region17
    $region16: #{joint_mlm_diff_mlp_forward.4} parent=1 // pred_region
      %vm19 = vcmask 254976
      %20 = vst.msk [vmem:[#allocation2] sm:$0x3] %vm19, 0.0
    $region17: #{joint_mlm_diff_mlp_forward.4} parent=1 // pred_fallthru
      _
    %v21 = vld [vmem:[#allocation2] sm:$0x3]
    %v22 = vld [vmem:[%s0] sm:$0xff]
    %v23 = vld [vmem:[%s0 + $0x8] sm:$0xff]
    %vm24 = vcmask 261120
    %v25 = vsel %vm24, %v22, 0.0
    %v26 = vrot.slane %v25, 4
    %v27 = vadd.f32 %v25, %v26
    %v28 = vrot.slane %v27, 2
    %v29 = vadd.f32 %v27, %v28
    %v30 = vrot.slane %v29, 1
    %v31 = vadd.f32 %v29, %v30
    %v32 = vsel %vm24, %v23, 0.0
    %v33 = vrot.slane %v32, 4
    %v34 = vadd.f32 %v32, %v33
    %v35 = vrot.slane %v34, 2
    %v36 = vadd.f32 %v34, %v35
    %v37 = vrot.slane %v36, 1
    %v38 = vadd.f32 %v36, %v37
    %vm41 = vcmask 1041409
    %v42 = vsel %vm41, %v38, %v31
    %v44 = vadd.f32 %v21, %v42
    %vm45 = vcmask 254976
    %46 = vst.msk [vmem:[#allocation2] sm:$0x3] %vm45, %v44
    // Predicated region
    $region18: #{joint_mlm_diff_mlp_forward.4} parent=1 // pred_check
      %p47 = pneg %p15
    $region19: #{joint_mlm_diff_mlp_forward.4} parent=1 // pred_check_branch
      %49 = sbr.rel (%p47) target = $region21
    $region20: #{joint_mlm_diff_mlp_forward.4} parent=1 // pred_region
      %v50 = vld [vmem:[#allocation2] sm:$0x3]
      %v51 = vmul.f32 %v50, 0.125
      %v52 = vld [vmem:[%s1] sm:$0xff]
      %v53 = vld [vmem:[%s1 + $0x8] sm:$0xff]
      %v54 = vld [vmem:[%s1 + $0x10] sm:$0xff]
      %v55 = vld [vmem:[%s1 + $0x18] sm:$0xff]
      %v56 = vld [vmem:[%s2] sm:$0x1]
      %v58 = vperm.slane %v56, 0
      %v61 = vsel %vm24, %v51, 0
      %63 = vmatpush.msra.mxu0 0.0
      %64 = vmatpush.msra.mxu0 0.0
      %65 = vmatpush.msra.mxu0 0.0
      %66 = vmatpush.msra.mxu0 0.0
      %67 = vmatpush.msra.mxu0 0.0
      %68 = vmatpush.msra.mxu0 0.0
      %69 = vmatpush.msra.mxu0 0.0
      %70 = vmatpush.msra.mxu0 0.0
      %71 = vmatpush.msra.mxu0 0.0
      %72 = vmatpush.msra.mxu0 0.0
      %73 = vmatpush.msra.mxu0 0.0
      %74 = vmatpush.msra.mxu0 0.0
      %75 = vmatpush.msra.mxu0 %v55
      %76 = vmatpush.msra.mxu0 %v54
      %77 = vmatpush.msra.mxu0 %v53
      %78 = vmatpush.msra.mxu0 %v52
      %79 = vmatmul.f32.gmra.mxu0 %v61
      %v80 = vpop.f32.mrf.mxu0
      %v81 = vadd.f32 %v58, %v80
      %82 = vdwg.mxu0
      %83 = vst [vmem:[#allocation3] sm:$0x3] %v81
    $region21: #{joint_mlm_diff_mlp_forward.4} parent=1 // pred_fallthru
      _
    // Predicated region
    $region22: #{joint_mlm_diff_mlp_forward.4} parent=1 // pred_check
      _
    $region23: #{joint_mlm_diff_mlp_forward.4} parent=1 // pred_check_branch
      %85 = sbr.rel (0) target = $region25
    $region24: #{joint_mlm_diff_mlp_forward.4} parent=1 // pred_region
      %87 = vsyncadd [#allocation4], 0
      %s89 = sshll.u32 [#allocation3], 4
      %s90 = int_to_ptr.vmem [resolvable:$true] %s89
      %s91 = sshll.u32 %s3, 4
      %s92 = int_to_ptr.hbm [resolvable:$true] %s91
      %94 = dma.vmem_to_hbm [thread:$0]  %s90, 32, %s92, [#allocation4]
    $region25: #{joint_mlm_diff_mlp_forward.4} parent=1 // pred_fallthru
      _
    // Predicated region
    $region26: #{joint_mlm_diff_mlp_forward.4} parent=1 // pred_check
      _
    $region27: #{joint_mlm_diff_mlp_forward.4} parent=1 // pred_check_branch
      %96 = sbr.rel (0) target = $region29
    $region28: #{joint_mlm_diff_mlp_forward.4} parent=1 // pred_region
      %98 = dma.done [#allocation4], 32
    $region29: #{joint_mlm_diff_mlp_forward.4} parent=1 // pred_fallthru
      _
    %99 = vsyncpa [#allocation4], 1

// kernel: joint_mlm_diff_mlp_forward.3
$region0: #{joint_mlm_diff_mlp_forward.3}
  #allocation0 [shape = 'u32[]', space=smem, size = 0x4, offset = 0x4, fixed_abs, tag = 'smem constant byte address 0x4 - core index']
  #allocation1 [shape = 'u32[72,128]{1,0:T(1,128)}', space=vmem, size = 0x9000, scoped, tag = 'internal scratch']
  #allocation2 [shape = 'f32[16,128]{1,0:T(8,128)}', space=vmem, size = 0x2000, scoped, tag = 'scratch operand']
  %s0 = inlined_call_operand.vmem [shape: f32[16,32], index: 0, kind: input, shape index: {}]
  %s1 = inlined_call_operand.vmem [shape: f32[16,32], index: 1, kind: input, shape index: {}]
  %s2 = inlined_call_operand.vmem [shape: f32[32,128], index: 2, kind: input, shape index: {}]
  %s3 = inlined_call_operand.vmem [shape: f32[1,128], index: 3, kind: input, shape index: {}]
  %s4 = inlined_call_operand.hbm [shape: f32[16,128], index: 4, kind: output, shape index: {}]
  %s5 = sld [smem:[#allocation0]]
  $region34: #{joint_mlm_diff_mlp_forward.3} parent=0
    _
  %s7 = ssub.s32 1, %s5
  %s8 = scalar_select 0, %s7, %s5
  $region1: #{joint_mlm_diff_mlp_forward.3} parent=0
    #allocation3 [shape = 'u8[8192]{0}', space=vmem, size = 0x2000, scoped, tag = 'output window, operand 0, single buffered']
    #allocation4 [shape = 's32[1]{0}', space=sflag, size = 0x4, scoped, tag = 'scoped memory for joint_mlm_diff_mlp_forward.3']
    %9 = vsyncpa [#allocation4], 0
    // Predicated region
    $region2: #{joint_mlm_diff_mlp_forward.3} parent=1 // pred_check
      _
    $region3: #{joint_mlm_diff_mlp_forward.3} parent=1 // pred_check_branch
      %11 = sbr.rel (0) target = $region5
    $region4: #{joint_mlm_diff_mlp_forward.3} parent=1 // pred_region
      _
    $region5: #{joint_mlm_diff_mlp_forward.3} parent=1 // pred_fallthru
      _
    // Predicated region
    $region6: #{joint_mlm_diff_mlp_forward.3} parent=1 // pred_check
      _
    $region7: #{joint_mlm_diff_mlp_forward.3} parent=1 // pred_check_branch
      %13 = sbr.rel (0) target = $region9
    $region8: #{joint_mlm_diff_mlp_forward.3} parent=1 // pred_region
      _
    $region9: #{joint_mlm_diff_mlp_forward.3} parent=1 // pred_fallthru
      _
    // Predicated region
    $region10: #{joint_mlm_diff_mlp_forward.3} parent=1 // pred_check
      _
    $region11: #{joint_mlm_diff_mlp_forward.3} parent=1 // pred_check_branch
      %15 = sbr.rel (0) target = $region13
    $region12: #{joint_mlm_diff_mlp_forward.3} parent=1 // pred_region
      _
    $region13: #{joint_mlm_diff_mlp_forward.3} parent=1 // pred_fallthru
      _
    // Predicated region
    $region14: #{joint_mlm_diff_mlp_forward.3} parent=1 // pred_check
      _
    $region15: #{joint_mlm_diff_mlp_forward.3} parent=1 // pred_check_branch
      %17 = sbr.rel (0) target = $region17
    $region16: #{joint_mlm_diff_mlp_forward.3} parent=1 // pred_region
      _
    $region17: #{joint_mlm_diff_mlp_forward.3} parent=1 // pred_fallthru
      _
    %p18 = scmp.eq.s32.totalorder 0, 0
    // Predicated region
    $region18: #{joint_mlm_diff_mlp_forward.3} parent=1 // pred_check
      %p19 = pneg %p18
    $region19: #{joint_mlm_diff_mlp_forward.3} parent=1 // pred_check_branch
      %21 = sbr.rel (%p19) target = $region21
    $region20: #{joint_mlm_diff_mlp_forward.3} parent=1 // pred_region
      %22 = vst [vmem:[#allocation2] sm:$0xff] 0.0
      %23 = vst [vmem:[#allocation2 + $0x8] sm:$0xff] 0.0
    $region21: #{joint_mlm_diff_mlp_forward.3} parent=1 // pred_fallthru
      _
    %v24 = vld [vmem:[%s0] sm:$0xff]
    %v25 = vld [vmem:[%s0 + $0x8] sm:$0xff]
    %v26 = vld [vmem:[%s1] sm:$0xff]
    %v27 = vld [vmem:[%s1 + $0x8] sm:$0xff]
    %v28 = vadd.f32 %v24, %v26
    %v29 = vadd.f32 %v25, %v27
    %v30 = vmul.f32 %v28, 0.5
    %v31 = vmul.f32 %v29, 0.5
    %v32 = vld [vmem:[#allocation2] sm:$0xff]
    %v33 = vld [vmem:[#allocation2 + $0x8] sm:$0xff]
    %v34 = vld [vmem:[%s2] sm:$0xff]
    %v35 = vld [vmem:[%s2 + $0x8] sm:$0xff]
    %v36 = vld [vmem:[%s2 + $0x10] sm:$0xff]
    %v37 = vld [vmem:[%s2 + $0x18] sm:$0xff]
    %vm38 = vcmask 261120
    %v40 = vsel %vm38, %v30, 0
    %v43 = vsel %vm38, %v31, 0
    %45 = vmatpush.msra.mxu0 0.0
    %46 = vmatpush.msra.mxu0 0.0
    %47 = vmatpush.msra.mxu0 0.0
    %48 = vmatpush.msra.mxu0 0.0
    %49 = vmatpush.msra.mxu0 0.0
    %50 = vmatpush.msra.mxu0 0.0
    %51 = vmatpush.msra.mxu0 0.0
    %52 = vmatpush.msra.mxu0 0.0
    %53 = vmatpush.msra.mxu0 0.0
    %54 = vmatpush.msra.mxu0 0.0
    %55 = vmatpush.msra.mxu0 0.0
    %56 = vmatpush.msra.mxu0 0.0
    %57 = vmatpush.msra.mxu0 %v37
    %58 = vmatpush.msra.mxu0 %v36
    %59 = vmatpush.msra.mxu0 %v35
    %60 = vmatpush.msra.mxu0 %v34
    %61 = vmatmul.f32.gmra.mxu0 %v40
    %v62 = vpop.f32.mrf.mxu0
    %v63 = vadd.f32 0.0, %v62
    %64 = vmatmul.f32.gmra.mxu0 %v43
    %v65 = vpop.f32.mrf.mxu0
    %v66 = vadd.f32 0.0, %v65
    %67 = vdwg.mxu0
    %v68 = vadd.f32 %v32, %v63
    %v69 = vadd.f32 %v33, %v66
    %70 = vst [vmem:[#allocation2] sm:$0xff] %v68
    %71 = vst [vmem:[#allocation2 + $0x8] sm:$0xff] %v69
    // Predicated region
    $region22: #{joint_mlm_diff_mlp_forward.3} parent=1 // pred_check
      %p72 = pneg %p18
    $region23: #{joint_mlm_diff_mlp_forward.3} parent=1 // pred_check_branch
      %74 = sbr.rel (%p72) target = $region25
    $region24: #{joint_mlm_diff_mlp_forward.3} parent=1 // pred_region
      %v75 = vld [vmem:[#allocation2] sm:$0xff]
      %v76 = vld [vmem:[#allocation2 + $0x8] sm:$0xff]
      %v77 = vld [vmem:[%s3] sm:$0x1]
      %v79 = vperm.slane %v77, 0
      %v81 = vadd.f32 %v75, %v79
      %v82 = vadd.f32 %v76, %v79
      %83 = vst [vmem:[#allocation3] sm:$0xff] %v81
      %84 = vst [vmem:[#allocation3 + $0x8] sm:$0xff] %v82
    $region25: #{joint_mlm_diff_mlp_forward.3} parent=1 // pred_fallthru
      _
    // Predicated region
    $region26: #{joint_mlm_diff_mlp_forward.3} parent=1 // pred_check
      _
    $region27: #{joint_mlm_diff_mlp_forward.3} parent=1 // pred_check_branch
      %86 = sbr.rel (0) target = $region29
    $region28: #{joint_mlm_diff_mlp_forward.3} parent=1 // pred_region
      %88 = vsyncadd [#allocation4], 0
      %s89 = sshll.u32 [#allocation3], 4
      %s90 = int_to_ptr.vmem [resolvable:$true] %s89
      %s91 = sshll.u32 %s4, 4
      %s92 = int_to_ptr.hbm [resolvable:$true] %s91
      %97 = dma.vmem_to_hbm [thread:$0]  %s90, 256, %s92, [#allocation4], 128, 128, 8
    $region29: #{joint_mlm_diff_mlp_forward.3} parent=1 // pred_fallthru
      _
    // Predicated region
    $region30: #{joint_mlm_diff_mlp_forward.3} parent=1 // pred_check
      _
    $region31: #{joint_mlm_diff_mlp_forward.3} parent=1 // pred_check_branch
      %99 = sbr.rel (0) target = $region33
    $region32: #{joint_mlm_diff_mlp_forward.3} parent=1 // pred_region
      %101 = dma.done [#allocation4], 256
    $region33: #{joint_mlm_diff_mlp_forward.3} parent=1 // pred_fallthru
      _
    %102 = vsyncpa [#allocation4], 1

</llo_original>
